<compile_context>
chip_gen: v7x
topology: tpu7x:2x2x1
jax: 0.10.0
libtpu: 0.0.40
codegen_flags: <defaults>
</compile_context>

<pallas_src>
import functools

import jax
import jax.numpy as jnp
from jax import lax
from jax.experimental import pallas as pl
from jax.experimental.pallas import tpu as pltpu


def _round_up(x, m):
    return ((x + m - 1) // m) * m


@functools.lru_cache(maxsize=None)
def _tpu_props():
    """Best-effort TPU probe: (num_tensorcores, per-TC VMEM bytes, is_v7x)."""
    kind = ""
    try:
        kind = jax.devices()[0].device_kind.lower()
    except Exception:
        pass
    is_v7 = ("v7" in kind) or ("7x" in kind)
    num_tc = 2 if is_v7 else 1                          # v7x has 2 TCs / chip
    vmem_phys = (64 if is_v7 else 128) * 1024 * 1024    # per-TC physical VMEM
    try:  # refine downward if the runtime can tell us
        q = int(getattr(pltpu.get_tpu_info(), "vmem_capacity_bytes", 0))
        if q > 0:
            vmem_phys = min(vmem_phys, q)
    except Exception:
        pass
    return num_tc, vmem_phys, is_v7


def _choose_group_size(n, lp, max_cols, num_tc):
    """Samples folded into the lane axis per grid step.

    Single-TC chips (v5e/v6e): the grid is a serial loop, so fold as many
    samples as the column budget allows into ONE fat lane-dense group.
    Dual-TC chips (v7x): ensure >= num_tc groups so both TensorCores get work
    (the grid axis is marked "parallel").
    """
    nb = max(1, min(n, max(1, max_cols // max(lp, 1))))
    if num_tc >= 2 and n > 1:
        if -(-n // nb) < num_tc:
            nb = -(-n // num_tc)
    return nb


def _conv_gemm_kernel(x_ref, w_ref, o_ref, patch_ref, *, tap_offsets, c_in_pad):
    """Single-GEMM conv for one batch group (v5e / v6e path).

    x_ref     : (C_in_pad, L_in)      flattened zero-padded input; channel
                                      C_in is all-ones (carries folded bias)
    w_ref     : (C_out, KK*C_in_pad)  taps-major flattened weights (+bias col)
    o_ref     : (C_out, n_cols)       flattened output columns (lane-dense)
    patch_ref : (KK*C_in_pad, n_cols) VMEM scratch patch matrix
    """
    n_cols = o_ref.shape[-1]
    # In-VMEM im2col.  C_in_pad is a full sublane pack, so every destination
    # row block is pack-aligned and pack-sized -> plain full-pack stores.
    for t, off in enumerate(tap_offsets):
        patch_ref[t * c_in_pad:(t + 1) * c_in_pad, :] = x_ref[:, off:off + n_cols]
    # One MXU matmul, contraction depth KK*C_in_pad, f32 accumulation.
    # Bias is already folded into the weights (ones channel): no epilogue add.
    o_ref[...] = jnp.dot(w_ref[...], patch_ref[...],
                         preferred_element_type=jnp.float32).astype(o_ref.dtype)


def _conv_tap_acc_kernel(x_ref, w_ref, o_ref, *, tap_offsets):
    """Per-tap accumulating-matmul conv (v7x path: the MRB accumulates in
    place, so skipping the patch store/reload halves in-kernel VMEM traffic).

    x_ref : (C_in_pad, L_in)
    w_ref : (KK, C_out, C_in_pad)
    o_ref : (C_out, n_cols)
    """
    n_cols = o_ref.shape[-1]
    acc = jnp.zeros((o_ref.shape[0], n_cols), jnp.float32)
    for t, off in enumerate(tap_offsets):
        acc += jnp.dot(w_ref[t], x_ref[:, off:off + n_cols],
                       preferred_element_type=jnp.float32)
    o_ref[...] = acc.astype(o_ref.dtype)


def conv2d_same(x, w, b, *, mxu_dtype=jnp.bfloat16, out_dtype=None,
                target_cols=8192, per_tap=None):
    """'Same' 2D convolution (PyTorch padding=(k-1)//2 semantics), NCHW/OIHW.

    mxu_dtype : dtype of the MXU operands (default bf16; set jnp.float32 for
                f32 parity with the PyTorch reference -- explicit knob).
    out_dtype : HBM dtype of the kernel output (default: x.dtype).  bf16 here
                halves writeback bytes on bandwidth-starved chips (v5e).
    per_tap   : None -> auto (per-tap accumulating matmuls on v7x, single
                GEMM elsewhere); True/False forces a path.
    """
    N, C_in, H, W = x.shape
    C_out, C_in_w, K_h, K_w = w.shape
    assert C_in == C_in_w
    p_h = (K_h - 1) // 2
    p_w = (K_w - 1) // 2
    Hp, Wp = H + 2 * p_h, W + 2 * p_w
    H_out = Hp - K_h + 1
    W_out = Wp - K_w + 1
    Lp = Hp * Wp                               # flat padded spatial length / sample
    KK = K_h * K_w

    compute_dtype = jnp.dtype(mxu_dtype if mxu_dtype is not None else x.dtype)
    out_dtype = jnp.dtype(out_dtype if out_dtype is not None else x.dtype)
    bc = compute_dtype.itemsize
    bo = out_dtype.itemsize

    num_tc, vmem_phys, is_v7 = _tpu_props()
    if per_tap is None:
        per_tap = is_v7

    # Sublane pack for the compute dtype (8 rows f32, 16 rows bf16).  +1 row
    # reserves the all-ones "bias" channel folded into the GEMM.
    pack = 8 * (4 // bc)
    C_in_pad = _round_up(C_in + 1, pack)
    KKC_pad = KK * C_in_pad

    # --- batch grouping / column sizing under a VMEM budget ------------------
    margin = 16 * 1024 * 1024
    budget_cap = max(vmem_phys - margin, 32 * 1024 * 1024)
    per_col = (2 * C_in_pad * bc + 2 * C_out * bo
               + (0 if per_tap else KKC_pad * bc))
    cols_budget = max(128, (budget_cap // 2) // per_col)
    nb = _choose_group_size(N, Lp, min(target_cols, cols_budget), num_tc)
    G = -(-N // nb)                            # grid steps (batch groups)
    N_pad = G * nb
    n_cols = nb * Lp
    n_cols_pad = _round_up(n_cols, 128)        # lane-dense (unmasked) stores
    max_off = (K_h - 1) * Wp + (K_w - 1)       # largest tap offset
    L_in = _round_up(n_cols_pad + max_off, 128)  # lane-aligned input window

    w_bytes = C_out * KKC_pad * bc
    ws = (2 * C_in_pad * L_in * bc            # x block, double-buffered
          + 2 * C_out * n_cols_pad * bo       # out block, double-buffered
          + (0 if per_tap else KKC_pad * n_cols_pad * bc)   # patch scratch
          + 2 * w_bytes)
    vmem_limit = int(min(budget_cap, max(32 * 1024 * 1024, ws + ws // 2)))
    if ws > vmem_limit:
        # TODO(synk): per-sample column tiling (inner grid axis with a tap
        # halo) for very large lookback * n_assets; fail loudly for now.
        raise ValueError(
            "Conv working set {} B exceeds the VMEM budget {} B; reduce "
            "lookback*n_assets or use smaller mxu/out dtypes.".format(ws, vmem_limit))

    # --- layout plumbing (plain XLA; padded input only, NO im2col in HBM) ---
    xp = jnp.pad(x.astype(compute_dtype),
                 ((0, N_pad - N), (0, 0), (p_h, p_h), (p_w, p_w)))
    xg = xp.reshape(G, nb, C_in, Hp, Wp).transpose(0, 2, 1, 3, 4)
    xg = xg.reshape(G, C_in, n_cols)
    # Channel padding to a full sublane pack: channel index C_in is an
    # all-ones row carrying the folded bias; remaining pad channels are zero.
    chan_pad = jnp.zeros((G, C_in_pad - C_in, n_cols), compute_dtype)
    chan_pad = chan_pad.at[:, 0, :].set(1.0)
    xg = jnp.concatenate([xg, chan_pad], axis=1)
    xg = jnp.pad(xg, ((0, 0), (0, 0), (0, L_in - n_cols)))   # (G, C_in_pad, L_in)

    # Taps-major weights with pack-padded channel blocks; bias as the tap-0
    # column hitting the ones channel (other taps' ones/pad columns are zero).
    w_full = jnp.zeros((C_out, KK, C_in_pad), compute_dtype)
    w_full = w_full.at[:, :, :C_in].set(
        jnp.transpose(w, (0, 2, 3, 1)).reshape(C_out, KK, C_in).astype(compute_dtype))
    w_full = w_full.at[:, 0, C_in].set(b.astype(compute_dtype))

    tap_offsets = tuple(kh * Wp + kw for kh in range(K_h) for kw in range(K_w))

    if per_tap:
        w_arg = jnp.transpose(w_full, (1, 0, 2))        # (KK, C_out, C_in_pad)
        w_spec = pl.BlockSpec((KK, C_out, C_in_pad), lambda g: (0, 0, 0))
        kernel = functools.partial(_conv_tap_acc_kernel, tap_offsets=tap_offsets)
        scratch = ()
    else:
        w_arg = w_full.reshape(C_out, KKC_pad)          # (C_out, KK*C_in_pad)
        w_spec = pl.BlockSpec((C_out, KKC_pad), lambda g: (0, 0))
        kernel = functools.partial(_conv_gemm_kernel, tap_offsets=tap_offsets,
                                   c_in_pad=C_in_pad)
        scratch = (pltpu.VMEM((KKC_pad, n_cols_pad), compute_dtype),)

    out = pl.pallas_call(
        kernel,
        out_shape=jax.ShapeDtypeStruct((G, C_out, n_cols_pad), out_dtype),
        grid=(G,),
        in_specs=[
            pl.BlockSpec((pl.Squeezed(), C_in_pad, L_in), lambda g: (g, 0, 0)),
            w_spec,
        ],
        out_specs=pl.BlockSpec((pl.Squeezed(), C_out, n_cols_pad),
                               lambda g: (g, 0, 0)),
        scratch_shapes=scratch,
        compiler_params=pltpu.CompilerParams(
            dimension_semantics=("parallel",),
            vmem_limit_bytes=vmem_limit,
        ),
    )(xg, w_arg)

    # --- un-flatten: drop lane round-up, padded borders and batch padding ---
    # NOTE: junk columns at a sample's bottom/right padded border read into
    # the next sample's data (or the tap halo) inside the kernel; they are
    # only correct to discard -- this crop is load-bearing for correctness.
    out = out[:, :, :n_cols].reshape(G, C_out, nb, Hp, Wp)
    out = out[:, :, :, :H_out, :W_out]
    out = out.transpose(0, 2, 1, 3, 4).reshape(N_pad, C_out, H_out, W_out)
    return out[:N]


class Conv:
    """JAX/Pallas re-implementation of deepdow's Conv layer (forward pass).

    By default MXU operands are bf16 (f32 accumulation) -- pass
    mxu_dtype=jnp.float32 for f32 parity with PyTorch.
    """

    def __init__(self, n_input_channels, n_output_channels, kernel_size=3,
                 method='2D', *, key=None, dtype=jnp.float32,
                 mxu_dtype=jnp.bfloat16):
        if method not in ('1D', '2D'):
            raise ValueError(
                "Invalid method {}, only supports '1D' or '2D'.".format(method))
        self.method = method
        self.kernel_size = kernel_size
        self.mxu_dtype = mxu_dtype
        if key is None:
            key = jax.random.PRNGKey(0)
        k_w, k_b = jax.random.split(key)

        if method == '2D':
            w_shape = (n_output_channels, n_input_channels, kernel_size, kernel_size)
            fan_in = n_input_channels * kernel_size * kernel_size
        else:
            w_shape = (n_output_channels, n_input_channels, kernel_size)
            fan_in = n_input_channels * kernel_size

        # Matches torch's default Conv init: U(-1/sqrt(fan_in), 1/sqrt(fan_in)).
        bound = 1.0 / (fan_in ** 0.5)
        self.weight = jax.random.uniform(k_w, w_shape, dtype, -bound, bound)
        self.bias = jax.random.uniform(k_b, (n_output_channels,), dtype, -bound, bound)

    def __call__(self, x):
        if self.method == '2D':
            return conv2d_same(x, self.weight, self.bias, mxu_dtype=self.mxu_dtype)
        # 1D conv == 2D conv with a singleton "height" dim (kernel 1 along it).
        # Batch folding inside conv2d_same keeps the lane axis dense even
        # though a single sample's lookback is far below 128 lanes.
        x2 = x[:, :, None, :]                # (N, C_in, 1, L)
        w2 = self.weight[:, :, None, :]      # (C_out, C_in, 1, K)
        y = conv2d_same(x2, w2, self.bias, mxu_dtype=self.mxu_dtype)
        return y[:, :, 0, :]


if __name__ == "__main__":
    key = jax.random.PRNGKey(0)
    k_x2, k_x1, k_x3, k_p2, k_p1 = jax.random.split(key, 5)

    # ---- 2D: (n_samples=2, n_input_channels=4, lookback=16, n_assets=16) ---
    conv_2d = Conv(4, 8, kernel_size=3, method='2D', key=k_p2)
    x2 = jax.random.normal(k_x2, (2, 4, 16, 16), jnp.float32)
    y2 = conv_2d(x2)
    jax.block_until_ready(y2)
    ref2 = lax.conv_general_dilated(
        x2, conv_2d.weight, window_strides=(1, 1), padding=[(1, 1), (1, 1)],
        dimension_numbers=('NCHW', 'OIHW', 'NCHW'),
        precision=lax.Precision.HIGHEST,
    ) + conv_2d.bias.reshape(1, -1, 1, 1)
    assert y2.shape == (2, 8, 16, 16)
    # Default path uses bf16 MXU operands (f32 accumulation) -> loose tolerance.
    assert jnp.allclose(y2, ref2, atol=3e-2, rtol=3e-2)

    # Indexing / layout checks with f32 MXU operands (tighter tolerance):
    # (a) auto path, (b) forced per-tap accumulating-matmul (v7x) path.
    y2_f32 = conv2d_same(x2, conv_2d.weight, conv_2d.bias, mxu_dtype=jnp.float32)
    jax.block_until_ready(y2_f32)
    assert jnp.allclose(y2_f32, ref2, atol=1e-2, rtol=1e-2)
    y2_tap = conv2d_same(x2, conv_2d.weight, conv_2d.bias,
                         mxu_dtype=jnp.float32, per_tap=True)
    jax.block_until_ready(y2_tap)
    assert jnp.allclose(y2_tap, ref2, atol=1e-2, rtol=1e-2)

    # Batch grouping / padding path (N=3, small target_cols -> nb=2, G=2).
    x3 = jax.random.normal(k_x3, (3, 4, 16, 16), jnp.float32)
    y3 = conv2d_same(x3, conv_2d.weight, conv_2d.bias,
                     mxu_dtype=jnp.float32, target_cols=700)
    jax.block_until_ready(y3)
    ref3 = lax.conv_general_dilated(
        x3, conv_2d.weight, window_strides=(1, 1), padding=[(1, 1), (1, 1)],
        dimension_numbers=('NCHW', 'OIHW', 'NCHW'),
        precision=lax.Precision.HIGHEST,
    ) + conv_2d.bias.reshape(1, -1, 1, 1)
    assert y3.shape == (3, 8, 16, 16)
    assert jnp.allclose(y3, ref3, atol=1e-2, rtol=1e-2)

    # ---- 1D: (n_samples=2, n_input_channels=4, lookback=16) ----------------
    conv_1d = Conv(4, 8, kernel_size=3, method='1D', key=k_p1)
    x1 = jax.random.normal(k_x1, (2, 4, 16), jnp.float32)
    y1 = conv_1d(x1)
    jax.block_until_ready(y1)
    ref1 = lax.conv_general_dilated(
        x1, conv_1d.weight, window_strides=(1,), padding=[(1, 1)],
        dimension_numbers=('NCH', 'OIH', 'NCH'),
        precision=lax.Precision.HIGHEST,
    ) + conv_1d.bias.reshape(1, -1, 1)
    assert y1.shape == (2, 8, 16)
    assert jnp.allclose(y1, ref1, atol=3e-2, rtol=3e-2)

    print("KERNEL_OK")
</pallas_src>

<mosaic_0001>
module attributes {stable_mosaic.version = 11 : i64} {
  func.func @_conv_gemm_kernel(%arg0: i32, %arg1: memref<1x16x896xbf16, #tpu.memory_space<vmem>>, %arg2: memref<8x144xbf16, #tpu.memory_space<vmem>>, %arg3: memref<1x8x768xf32, #tpu.memory_space<vmem>>, %arg4: memref<144x768xbf16, #tpu.memory_space<vmem>>) attributes {dimension_semantics = [#tpu.dimension_semantics<parallel>], iteration_bounds = array<i64: 1>, scalar_prefetch = 0 : i64, scratch_operands = 1 : i64, tpu.core_type = #tpu.core_type<tc>, window_params = [{transform_indices = @transform_0, window_bounds = array<i64: 1, 16, 896>}, {pipeline_mode = #tpu.pipeline_mode<synchronous>, transform_indices = @transform_1, window_bounds = array<i64: 8, 144>}, {transform_indices = @transform_2, window_bounds = array<i64: 1, 8, 768>}]} {
    %c0 = arith.constant 0 : index
    %c0_0 = arith.constant 0 : index
    %c0_1 = arith.constant 0 : index
    %0 = vector.load %arg1[%c0, %c0_0, %c0_1] : memref<1x16x896xbf16, #tpu.memory_space<vmem>>, vector<1x16x768xbf16>
    %1 = vector.shape_cast %0 : vector<1x16x768xbf16> to vector<16x768xbf16>
    %c0_2 = arith.constant 0 : index
    %c0_3 = arith.constant 0 : index
    %2 = vector.load %arg4[%c0_2, %c0_3] : memref<144x768xbf16, #tpu.memory_space<vmem>>, vector<16x768xbf16>
    tpu.vector_store %arg4[%c0_2, %c0_3], %1 {strides = array<i32>} : memref<144x768xbf16, #tpu.memory_space<vmem>>, vector<16x768xbf16>,
    %c0_4 = arith.constant 0 : index
    %c0_5 = arith.constant 0 : index
    %c1 = arith.constant 1 : index
    %3 = vector.load %arg1[%c0_4, %c0_5, %c1] : memref<1x16x896xbf16, #tpu.memory_space<vmem>>, vector<1x16x768xbf16>
    %4 = vector.shape_cast %3 : vector<1x16x768xbf16> to vector<16x768xbf16>
    %c16 = arith.constant 16 : index
    %c0_6 = arith.constant 0 : index
    %5 = vector.load %arg4[%c16, %c0_6] : memref<144x768xbf16, #tpu.memory_space<vmem>>, vector<16x768xbf16>
    tpu.vector_store %arg4[%c16, %c0_6], %4 {strides = array<i32>} : memref<144x768xbf16, #tpu.memory_space<vmem>>, vector<16x768xbf16>,
    %c0_7 = arith.constant 0 : index
    %c0_8 = arith.constant 0 : index
    %c2 = arith.constant 2 : index
    %6 = vector.load %arg1[%c0_7, %c0_8, %c2] : memref<1x16x896xbf16, #tpu.memory_space<vmem>>, vector<1x16x768xbf16>
    %7 = vector.shape_cast %6 : vector<1x16x768xbf16> to vector<16x768xbf16>
    %c32 = arith.constant 32 : index
    %c0_9 = arith.constant 0 : index
    %8 = vector.load %arg4[%c32, %c0_9] : memref<144x768xbf16, #tpu.memory_space<vmem>>, vector<16x768xbf16>
    tpu.vector_store %arg4[%c32, %c0_9], %7 {strides = array<i32>} : memref<144x768xbf16, #tpu.memory_space<vmem>>, vector<16x768xbf16>,
    %c0_10 = arith.constant 0 : index
    %c0_11 = arith.constant 0 : index
    %c18 = arith.constant 18 : index
    %9 = vector.load %arg1[%c0_10, %c0_11, %c18] : memref<1x16x896xbf16, #tpu.memory_space<vmem>>, vector<1x16x768xbf16>
    %10 = vector.shape_cast %9 : vector<1x16x768xbf16> to vector<16x768xbf16>
    %c48 = arith.constant 48 : index
    %c0_12 = arith.constant 0 : index
    %11 = vector.load %arg4[%c48, %c0_12] : memref<144x768xbf16, #tpu.memory_space<vmem>>, vector<16x768xbf16>
    tpu.vector_store %arg4[%c48, %c0_12], %10 {strides = array<i32>} : memref<144x768xbf16, #tpu.memory_space<vmem>>, vector<16x768xbf16>,
    %c0_13 = arith.constant 0 : index
    %c0_14 = arith.constant 0 : index
    %c19 = arith.constant 19 : index
    %12 = vector.load %arg1[%c0_13, %c0_14, %c19] : memref<1x16x896xbf16, #tpu.memory_space<vmem>>, vector<1x16x768xbf16>
    %13 = vector.shape_cast %12 : vector<1x16x768xbf16> to vector<16x768xbf16>
    %c64 = arith.constant 64 : index
    %c0_15 = arith.constant 0 : index
    %14 = vector.load %arg4[%c64, %c0_15] : memref<144x768xbf16, #tpu.memory_space<vmem>>, vector<16x768xbf16>
    tpu.vector_store %arg4[%c64, %c0_15], %13 {strides = array<i32>} : memref<144x768xbf16, #tpu.memory_space<vmem>>, vector<16x768xbf16>,
    %c0_16 = arith.constant 0 : index
    %c0_17 = arith.constant 0 : index
    %c20 = arith.constant 20 : index
    %15 = vector.load %arg1[%c0_16, %c0_17, %c20] : memref<1x16x896xbf16, #tpu.memory_space<vmem>>, vector<1x16x768xbf16>
    %16 = vector.shape_cast %15 : vector<1x16x768xbf16> to vector<16x768xbf16>
    %c80 = arith.constant 80 : index
    %c0_18 = arith.constant 0 : index
    %17 = vector.load %arg4[%c80, %c0_18] : memref<144x768xbf16, #tpu.memory_space<vmem>>, vector<16x768xbf16>
    tpu.vector_store %arg4[%c80, %c0_18], %16 {strides = array<i32>} : memref<144x768xbf16, #tpu.memory_space<vmem>>, vector<16x768xbf16>,
    %c0_19 = arith.constant 0 : index
    %c0_20 = arith.constant 0 : index
    %c36 = arith.constant 36 : index
    %18 = vector.load %arg1[%c0_19, %c0_20, %c36] : memref<1x16x896xbf16, #tpu.memory_space<vmem>>, vector<1x16x768xbf16>
    %19 = vector.shape_cast %18 : vector<1x16x768xbf16> to vector<16x768xbf16>
    %c96 = arith.constant 96 : index
    %c0_21 = arith.constant 0 : index
    %20 = vector.load %arg4[%c96, %c0_21] : memref<144x768xbf16, #tpu.memory_space<vmem>>, vector<16x768xbf16>
    tpu.vector_store %arg4[%c96, %c0_21], %19 {strides = array<i32>} : memref<144x768xbf16, #tpu.memory_space<vmem>>, vector<16x768xbf16>,
    %c0_22 = arith.constant 0 : index
    %c0_23 = arith.constant 0 : index
    %c37 = arith.constant 37 : index
    %21 = vector.load %arg1[%c0_22, %c0_23, %c37] : memref<1x16x896xbf16, #tpu.memory_space<vmem>>, vector<1x16x768xbf16>
    %22 = vector.shape_cast %21 : vector<1x16x768xbf16> to vector<16x768xbf16>
    %c112 = arith.constant 112 : index
    %c0_24 = arith.constant 0 : index
    %23 = vector.load %arg4[%c112, %c0_24] : memref<144x768xbf16, #tpu.memory_space<vmem>>, vector<16x768xbf16>
    tpu.vector_store %arg4[%c112, %c0_24], %22 {strides = array<i32>} : memref<144x768xbf16, #tpu.memory_space<vmem>>, vector<16x768xbf16>,
    %c0_25 = arith.constant 0 : index
    %c0_26 = arith.constant 0 : index
    %c38 = arith.constant 38 : index
    %24 = vector.load %arg1[%c0_25, %c0_26, %c38] : memref<1x16x896xbf16, #tpu.memory_space<vmem>>, vector<1x16x768xbf16>
    %25 = vector.shape_cast %24 : vector<1x16x768xbf16> to vector<16x768xbf16>
    %c128 = arith.constant 128 : index
    %c0_27 = arith.constant 0 : index
    %26 = vector.load %arg4[%c128, %c0_27] : memref<144x768xbf16, #tpu.memory_space<vmem>>, vector<16x768xbf16>
    tpu.vector_store %arg4[%c128, %c0_27], %25 {strides = array<i32>} : memref<144x768xbf16, #tpu.memory_space<vmem>>, vector<16x768xbf16>,
    %c0_28 = arith.constant 0 : index
    %c0_29 = arith.constant 0 : index
    %27 = vector.load %arg2[%c0_28, %c0_29] : memref<8x144xbf16, #tpu.memory_space<vmem>>, vector<8x144xbf16>
    %c0_30 = arith.constant 0 : index
    %c0_31 = arith.constant 0 : index
    %28 = vector.load %arg4[%c0_30, %c0_31] : memref<144x768xbf16, #tpu.memory_space<vmem>>, vector<144x768xbf16>
    %cst = arith.constant dense<0.000000e+00> : vector<8x768xf32>
    %29 = tpu.matmul %27, %28, %cst {dimension_numbers = #tpu.dot_dimension_numbers<[1], [0], [0], [1], [0, 0, 1, 1], [], []>} : vector<8x144xbf16>, vector<144x768xbf16>, vector<8x768xf32> -> vector<8x768xf32>
    %c0_32 = arith.constant 0 : index
    %c0_33 = arith.constant 0 : index
    %c0_34 = arith.constant 0 : index
    %30 = vector.load %arg3[%c0_32, %c0_33, %c0_34] : memref<1x8x768xf32, #tpu.memory_space<vmem>>, vector<1x8x768xf32>
    %31 = vector.shape_cast %30 : vector<1x8x768xf32> to vector<8x768xf32>
    %32 = vector.shape_cast %29 : vector<8x768xf32> to vector<1x8x768xf32>
    tpu.vector_store %arg3[%c0_32, %c0_33, %c0_34], %32 {strides = array<i32>} : memref<1x8x768xf32, #tpu.memory_space<vmem>>, vector<1x8x768xf32>,
    return
  }
  func.func @transform_0(%arg0: i32) -> (i32, i32, i32) {
    %c0_i32 = arith.constant 0 : i32
    %c0_i32_0 = arith.constant 0 : i32
    %c0_i32_1 = arith.constant 0 : i32
    return %arg0, %c0_i32, %c0_i32_0 : i32, i32, i32
  }
  func.func @transform_1(%arg0: i32) -> (i32, i32) {
    %c0_i32 = arith.constant 0 : i32
    %c0_i32_0 = arith.constant 0 : i32
    %c0_i32_1 = arith.constant 0 : i32
    return %c0_i32, %c0_i32_0 : i32, i32
  }
  func.func @transform_2(%arg0: i32) -> (i32, i32, i32) {
    %c0_i32 = arith.constant 0 : i32
    %c0_i32_0 = arith.constant 0 : i32
    %c0_i32_1 = arith.constant 0 : i32
    return %arg0, %c0_i32, %c0_i32_0 : i32, i32, i32
  }
}

</mosaic_0001>

<llo_original>
// kernel: tpu_custom_call.1
$region0: #{tpu_custom_call.1}
  #allocation0 [shape = 'u32[]', space=smem, size = 0x4, offset = 0x4, fixed_abs, tag = 'smem constant byte address 0x4 - core index']
  #allocation1 [shape = 'u32[144,128]{1,0:T(1,128)}', space=vmem, size = 0x12000, scoped, tag = 'internal scratch']
  #allocation2 [shape = 'bf16[144,768]{1,0:T(16,128)(2,1)}', space=vmem, size = 0x36000, scoped, tag = 'scratch operand']
  %s0 = inlined_call_operand.hbm [shape: bf16[1,16,896], index: 0, kind: input, shape index: {}]
  %s1 = inlined_call_operand.hbm [shape: bf16[8,144], index: 1, kind: input, shape index: {}]
  %s2 = inlined_call_operand.hbm [shape: f32[1,8,768], index: 2, kind: output, shape index: {}]
  %s3 = sld [smem:[#allocation0]]
  $region26: #{tpu_custom_call.1} parent=0
    _
  %s5 = ssub.s32 1, %s3
  %s6 = scalar_select 0, %s5, %s3
  $region1: #{tpu_custom_call.1} parent=0
    #allocation3 [shape = 'u8[28672]{0}', space=vmem, size = 0x7000, scoped, tag = 'input window, operand 0, single buffered']
    #allocation4 [shape = 's32[1]{0}', space=sflag, size = 0x4, scoped, tag = 'scoped memory for tpu_custom_call.1']
    #allocation5 [shape = 's32[1]{0}', space=sflag, size = 0x4, scoped, tag = 'scoped memory for tpu_custom_call.1']
    #allocation6 [shape = 'u8[4096]{0}', space=vmem, size = 0x1000, scoped, tag = 'input window, operand 1, single buffered']
    #allocation7 [shape = 's32[1]{0}', space=sflag, size = 0x4, scoped, tag = 'scoped memory for tpu_custom_call.1']
    #allocation8 [shape = 'u8[24576]{0}', space=vmem, size = 0x6000, scoped, tag = 'output window, operand 0, single buffered']
    %7 = vsyncpa [#allocation4], 0
    %8 = vsyncpa [#allocation7], 0
    %9 = vsyncpa [#allocation5], 0
    // Predicated region
    $region2: #{tpu_custom_call.1} parent=1 // pred_check
      _
    $region3: #{tpu_custom_call.1} parent=1 // pred_check_branch
      %11 = sbr.rel (0) target = $region5
    $region4: #{tpu_custom_call.1} parent=1 // pred_region
      %s13 = ssub.s32 896, 896
      %14 = vsyncadd [#allocation4], %s13
      %s15 = sshll.u32 [#allocation3], 4
      %s16 = int_to_ptr.vmem [resolvable:$true] %s15
      %21 = dma.hbm_to_vmem [thread:$0]  %s0, 896, %s16, [#allocation4], 448, 448, 28
    $region5: #{tpu_custom_call.1} parent=1 // pred_fallthru
      _
    // Predicated region
    $region6: #{tpu_custom_call.1} parent=1 // pred_check
      _
    $region7: #{tpu_custom_call.1} parent=1 // pred_check_branch
      %23 = sbr.rel (0) target = $region9
    $region8: #{tpu_custom_call.1} parent=1 // pred_region
      %s25 = ssub.s32 128, 128
      %26 = vsyncadd [#allocation7], %s25
      %s28 = sshll.u32 [#allocation6], 4
      %s29 = int_to_ptr.vmem [resolvable:$true] %s28
      %31 = dma.hbm_to_vmem [thread:$0]  %s1, 128, %s29, [#allocation7]
    $region9: #{tpu_custom_call.1} parent=1 // pred_fallthru
      _
    // Predicated region
    $region10: #{tpu_custom_call.1} parent=1 // pred_check
      _
    $region11: #{tpu_custom_call.1} parent=1 // pred_check_branch
      %33 = sbr.rel (0) target = $region13
    $region12: #{tpu_custom_call.1} parent=1 // pred_region
      %34 = dma.done [#allocation4], 896
    $region13: #{tpu_custom_call.1} parent=1 // pred_fallthru
      _
    // Predicated region
    $region14: #{tpu_custom_call.1} parent=1 // pred_check
      _
    $region15: #{tpu_custom_call.1} parent=1 // pred_check_branch
      %36 = sbr.rel (0) target = $region17
    $region16: #{tpu_custom_call.1} parent=1 // pred_region
      %37 = dma.done [#allocation7], 128
    $region17: #{tpu_custom_call.1} parent=1 // pred_fallthru
      _
    %v39 = vld [vmem:[#allocation3] sm:$0xff]
    %v40 = vld [vmem:[#allocation3 + $0x8] sm:$0xff]
    %v41 = vld [vmem:[#allocation3 + $0x10] sm:$0xff]
    %v42 = vld [vmem:[#allocation3 + $0x1c] sm:$0xff]
    %v43 = vld [vmem:[#allocation3 + $0x24] sm:$0xff]
    %v44 = vld [vmem:[#allocation3 + $0x2c] sm:$0xff]
    %v51 = vunpack.c.l.b16 %v39
    %v52 = vunpack.c.h.b16 %v39
    %v53 = vunpack.c.l.b16 %v40
    %v54 = vunpack.c.h.b16 %v40
    %v55 = vunpack.c.l.b16 %v41
    %v56 = vunpack.c.h.b16 %v41
    %v57 = vunpack.c.l.b16 %v42
    %v58 = vunpack.c.h.b16 %v42
    %v59 = vunpack.c.l.b16 %v43
    %v60 = vunpack.c.h.b16 %v43
    %v61 = vunpack.c.l.b16 %v44
    %v62 = vunpack.c.h.b16 %v44
    %v63 = vpack.c.b16 %v57, %v51
    %v64 = vpack.c.b16 %v58, %v52
    %v65 = vpack.c.b16 %v59, %v53
    %v66 = vpack.c.b16 %v60, %v54
    %v67 = vpack.c.b16 %v61, %v55
    %v68 = vpack.c.b16 %v62, %v56
    %75 = vst [vmem:[#allocation2] sm:$0xff] %v63
    %76 = vst [vmem:[#allocation2 + $0x8] sm:$0xff] %v64
    %77 = vst [vmem:[#allocation2 + $0x10] sm:$0xff] %v65
    %78 = vst [vmem:[#allocation2 + $0x18] sm:$0xff] %v66
    %79 = vst [vmem:[#allocation2 + $0x20] sm:$0xff] %v67
    %80 = vst [vmem:[#allocation2 + $0x28] sm:$0xff] %v68
    %v81 = vld [vmem:[#allocation3] sm:$0xff]
    %v82 = vld [vmem:[#allocation3 + $0x8] sm:$0xff]
    %v83 = vld [vmem:[#allocation3 + $0x10] sm:$0xff]
    %v84 = vld [vmem:[#allocation3 + $0x18] sm:$0xf]
    %v85 = vld [vmem:[#allocation3 + $0x1c] sm:$0xff]
    %v86 = vld [vmem:[#allocation3 + $0x24] sm:$0xff]
    %v87 = vld [vmem:[#allocation3 + $0x2c] sm:$0xff]
    %v88 = vld [vmem:[#allocation3 + $0x34] sm:$0xf]
    %v97 = vunpack.c.l.b16 %v81
    %v98 = vunpack.c.h.b16 %v81
    %v99 = vunpack.c.l.b16 %v82
    %v100 = vunpack.c.h.b16 %v82
    %v101 = vunpack.c.l.b16 %v83
    %v102 = vunpack.c.h.b16 %v83
    %v103 = vunpack.c.l.b16 %v84
    %v104 = vunpack.c.l.b16 %v85
    %v105 = vunpack.c.h.b16 %v85
    %v106 = vunpack.c.l.b16 %v86
    %v107 = vunpack.c.h.b16 %v86
    %v108 = vunpack.c.l.b16 %v87
    %v109 = vunpack.c.h.b16 %v87
    %v110 = vunpack.c.l.b16 %v88
    %v111 = vpack.c.b16 %v104, %v97
    %v112 = vpack.c.b16 %v105, %v98
    %v113 = vpack.c.b16 %v106, %v99
    %v114 = vpack.c.b16 %v107, %v100
    %v115 = vpack.c.b16 %v108, %v101
    %v116 = vpack.c.b16 %v109, %v102
    %v117 = vpack.c.b16 %v110, %v103
    %118 = vrot.lane.b32.xlu0 %v111, 127
    %v119 = vpop.permute.xlu0 %118
    %120 = vrot.lane.b32.xlu0 %v112, 127
    %v121 = vpop.permute.xlu0 %120
    %122 = vrot.lane.b32.xlu0 %v113, 127
    %v123 = vpop.permute.xlu0 %122
    %124 = vrot.lane.b32.xlu0 %v114, 127
    %v125 = vpop.permute.xlu0 %124
    %126 = vrot.lane.b32.xlu0 %v115, 127
    %v127 = vpop.permute.xlu0 %126
    %128 = vrot.lane.b32.xlu0 %v116, 127
    %v129 = vpop.permute.xlu0 %128
    %130 = vrot.lane.b32.xlu0 %v117, 127
    %v131 = vpop.permute.xlu0 %130
    %vm132 = vcmask 1039360
    %v133 = vsel %vm132, %v119, %v121
    %v134 = vsel %vm132, %v121, %v123
    %v135 = vsel %vm132, %v123, %v125
    %v136 = vsel %vm132, %v125, %v127
    %v137 = vsel %vm132, %v127, %v129
    %v138 = vsel %vm132, %v129, %v131
    %145 = vst [vmem:[#allocation2 + $0x30] sm:$0xff] %v133
    %146 = vst [vmem:[#allocation2 + $0x38] sm:$0xff] %v134
    %147 = vst [vmem:[#allocation2 + $0x40] sm:$0xff] %v135
    %148 = vst [vmem:[#allocation2 + $0x48] sm:$0xff] %v136
    %149 = vst [vmem:[#allocation2 + $0x50] sm:$0xff] %v137
    %150 = vst [vmem:[#allocation2 + $0x58] sm:$0xff] %v138
    %v151 = vld [vmem:[#allocation3] sm:$0xff]
    %v152 = vld [vmem:[#allocation3 + $0x8] sm:$0xff]
    %v153 = vld [vmem:[#allocation3 + $0x10] sm:$0xff]
    %v154 = vld [vmem:[#allocation3 + $0x18] sm:$0xf]
    %v155 = vld [vmem:[#allocation3 + $0x1c] sm:$0xff]
    %v156 = vld [vmem:[#allocation3 + $0x24] sm:$0xff]
    %v157 = vld [vmem:[#allocation3 + $0x2c] sm:$0xff]
    %v158 = vld [vmem:[#allocation3 + $0x34] sm:$0xf]
    %v167 = vunpack.c.l.b16 %v151
    %v168 = vunpack.c.h.b16 %v151
    %v169 = vunpack.c.l.b16 %v152
    %v170 = vunpack.c.h.b16 %v152
    %v171 = vunpack.c.l.b16 %v153
    %v172 = vunpack.c.h.b16 %v153
    %v173 = vunpack.c.l.b16 %v154
    %v174 = vunpack.c.l.b16 %v155
    %v175 = vunpack.c.h.b16 %v155
    %v176 = vunpack.c.l.b16 %v156
    %v177 = vunpack.c.h.b16 %v156
    %v178 = vunpack.c.l.b16 %v157
    %v179 = vunpack.c.h.b16 %v157
    %v180 = vunpack.c.l.b16 %v158
    %v181 = vpack.c.b16 %v174, %v167
    %v182 = vpack.c.b16 %v175, %v168
    %v183 = vpack.c.b16 %v176, %v169
    %v184 = vpack.c.b16 %v177, %v170
    %v185 = vpack.c.b16 %v178, %v171
    %v186 = vpack.c.b16 %v179, %v172
    %v187 = vpack.c.b16 %v180, %v173
    %188 = vrot.lane.b32.xlu0 %v181, 126
    %v189 = vpop.permute.xlu0 %188
    %190 = vrot.lane.b32.xlu0 %v182, 126
    %v191 = vpop.permute.xlu0 %190
    %192 = vrot.lane.b32.xlu0 %v183, 126
    %v193 = vpop.permute.xlu0 %192
    %194 = vrot.lane.b32.xlu0 %v184, 126
    %v195 = vpop.permute.xlu0 %194
    %196 = vrot.lane.b32.xlu0 %v185, 126
    %v197 = vpop.permute.xlu0 %196
    %198 = vrot.lane.b32.xlu0 %v186, 126
    %v199 = vpop.permute.xlu0 %198
    %200 = vrot.lane.b32.xlu0 %v187, 126
    %v201 = vpop.permute.xlu0 %200
    %vm202 = vcmask 1031168
    %v203 = vsel %vm202, %v189, %v191
    %v204 = vsel %vm202, %v191, %v193
    %v205 = vsel %vm202, %v193, %v195
    %v206 = vsel %vm202, %v195, %v197
    %v207 = vsel %vm202, %v197, %v199
    %v208 = vsel %vm202, %v199, %v201
    %215 = vst [vmem:[#allocation2 + $0x60] sm:$0xff] %v203
    %216 = vst [vmem:[#allocation2 + $0x68] sm:$0xff] %v204
    %217 = vst [vmem:[#allocation2 + $0x70] sm:$0xff] %v205
    %218 = vst [vmem:[#allocation2 + $0x78] sm:$0xff] %v206
    %219 = vst [vmem:[#allocation2 + $0x80] sm:$0xff] %v207
    %220 = vst [vmem:[#allocation2 + $0x88] sm:$0xff] %v208
    %v221 = vld [vmem:[#allocation3] sm:$0xff]
    %v222 = vld [vmem:[#allocation3 + $0x8] sm:$0xff]
    %v223 = vld [vmem:[#allocation3 + $0x10] sm:$0xff]
    %v224 = vld [vmem:[#allocation3 + $0x18] sm:$0xf]
    %v225 = vld [vmem:[#allocation3 + $0x1c] sm:$0xff]
    %v226 = vld [vmem:[#allocation3 + $0x24] sm:$0xff]
    %v227 = vld [vmem:[#allocation3 + $0x2c] sm:$0xff]
    %v228 = vld [vmem:[#allocation3 + $0x34] sm:$0xf]
    %v237 = vunpack.c.l.b16 %v221
    %v238 = vunpack.c.h.b16 %v221
    %v239 = vunpack.c.l.b16 %v222
    %v240 = vunpack.c.h.b16 %v222
    %v241 = vunpack.c.l.b16 %v223
    %v242 = vunpack.c.h.b16 %v223
    %v243 = vunpack.c.l.b16 %v224
    %v244 = vunpack.c.l.b16 %v225
    %v245 = vunpack.c.h.b16 %v225
    %v246 = vunpack.c.l.b16 %v226
    %v247 = vunpack.c.h.b16 %v226
    %v248 = vunpack.c.l.b16 %v227
    %v249 = vunpack.c.h.b16 %v227
    %v250 = vunpack.c.l.b16 %v228
    %v251 = vpack.c.b16 %v244, %v237
    %v252 = vpack.c.b16 %v245, %v238
    %v253 = vpack.c.b16 %v246, %v239
    %v254 = vpack.c.b16 %v247, %v240
    %v255 = vpack.c.b16 %v248, %v241
    %v256 = vpack.c.b16 %v249, %v242
    %v257 = vpack.c.b16 %v250, %v243
    %258 = vrot.lane.b32.xlu0 %v251, 110
    %v259 = vpop.permute.xlu0 %258
    %260 = vrot.lane.b32.xlu0 %v252, 110
    %v261 = vpop.permute.xlu0 %260
    %262 = vrot.lane.b32.xlu0 %v253, 110
    %v263 = vpop.permute.xlu0 %262
    %264 = vrot.lane.b32.xlu0 %v254, 110
    %v265 = vpop.permute.xlu0 %264
    %266 = vrot.lane.b32.xlu0 %v255, 110
    %v267 = vpop.permute.xlu0 %266
    %268 = vrot.lane.b32.xlu0 %v256, 110
    %v269 = vpop.permute.xlu0 %268
    %270 = vrot.lane.b32.xlu0 %v257, 110
    %v271 = vpop.permute.xlu0 %270
    %vm272 = vcmask 900096
    %v273 = vsel %vm272, %v259, %v261
    %v274 = vsel %vm272, %v261, %v263
    %v275 = vsel %vm272, %v263, %v265
    %v276 = vsel %vm272, %v265, %v267
    %v277 = vsel %vm272, %v267, %v269
    %v278 = vsel %vm272, %v269, %v271
    %285 = vst [vmem:[#allocation2 + $0x90] sm:$0xff] %v273
    %286 = vst [vmem:[#allocation2 + $0x98] sm:$0xff] %v274
    %287 = vst [vmem:[#allocation2 + $0xa0] sm:$0xff] %v275
    %288 = vst [vmem:[#allocation2 + $0xa8] sm:$0xff] %v276
    %289 = vst [vmem:[#allocation2 + $0xb0] sm:$0xff] %v277
    %290 = vst [vmem:[#allocation2 + $0xb8] sm:$0xff] %v278
    %v291 = vld [vmem:[#allocation3] sm:$0xff]
    %v292 = vld [vmem:[#allocation3 + $0x8] sm:$0xff]
    %v293 = vld [vmem:[#allocation3 + $0x10] sm:$0xff]
    %v294 = vld [vmem:[#allocation3 + $0x18] sm:$0xf]
    %v295 = vld [vmem:[#allocation3 + $0x1c] sm:$0xff]
    %v296 = vld [vmem:[#allocation3 + $0x24] sm:$0xff]
    %v297 = vld [vmem:[#allocation3 + $0x2c] sm:$0xff]
    %v298 = vld [vmem:[#allocation3 + $0x34] sm:$0xf]
    %v307 = vunpack.c.l.b16 %v291
    %v308 = vunpack.c.h.b16 %v291
    %v309 = vunpack.c.l.b16 %v292
    %v310 = vunpack.c.h.b16 %v292
    %v311 = vunpack.c.l.b16 %v293
    %v312 = vunpack.c.h.b16 %v293
    %v313 = vunpack.c.l.b16 %v294
    %v314 = vunpack.c.l.b16 %v295
    %v315 = vunpack.c.h.b16 %v295
    %v316 = vunpack.c.l.b16 %v296
    %v317 = vunpack.c.h.b16 %v296
    %v318 = vunpack.c.l.b16 %v297
    %v319 = vunpack.c.h.b16 %v297
    %v320 = vunpack.c.l.b16 %v298
    %v321 = vpack.c.b16 %v314, %v307
    %v322 = vpack.c.b16 %v315, %v308
    %v323 = vpack.c.b16 %v316, %v309
    %v324 = vpack.c.b16 %v317, %v310
    %v325 = vpack.c.b16 %v318, %v311
    %v326 = vpack.c.b16 %v319, %v312
    %v327 = vpack.c.b16 %v320, %v313
    %328 = vrot.lane.b32.xlu0 %v321, 109
    %v329 = vpop.permute.xlu0 %328
    %330 = vrot.lane.b32.xlu0 %v322, 109
    %v331 = vpop.permute.xlu0 %330
    %332 = vrot.lane.b32.xlu0 %v323, 109
    %v333 = vpop.permute.xlu0 %332
    %334 = vrot.lane.b32.xlu0 %v324, 109
    %v335 = vpop.permute.xlu0 %334
    %336 = vrot.lane.b32.xlu0 %v325, 109
    %v337 = vpop.permute.xlu0 %336
    %338 = vrot.lane.b32.xlu0 %v326, 109
    %v339 = vpop.permute.xlu0 %338
    %340 = vrot.lane.b32.xlu0 %v327, 109
    %v341 = vpop.permute.xlu0 %340
    %vm342 = vcmask 891904
    %v343 = vsel %vm342, %v329, %v331
    %v344 = vsel %vm342, %v331, %v333
    %v345 = vsel %vm342, %v333, %v335
    %v346 = vsel %vm342, %v335, %v337
    %v347 = vsel %vm342, %v337, %v339
    %v348 = vsel %vm342, %v339, %v341
    %355 = vst [vmem:[#allocation2 + $0xc0] sm:$0xff] %v343
    %356 = vst [vmem:[#allocation2 + $0xc8] sm:$0xff] %v344
    %357 = vst [vmem:[#allocation2 + $0xd0] sm:$0xff] %v345
    %358 = vst [vmem:[#allocation2 + $0xd8] sm:$0xff] %v346
    %359 = vst [vmem:[#allocation2 + $0xe0] sm:$0xff] %v347
    %360 = vst [vmem:[#allocation2 + $0xe8] sm:$0xff] %v348
    %v361 = vld [vmem:[#allocation3] sm:$0xff]
    %v362 = vld [vmem:[#allocation3 + $0x8] sm:$0xff]
    %v363 = vld [vmem:[#allocation3 + $0x10] sm:$0xff]
    %v364 = vld [vmem:[#allocation3 + $0x18] sm:$0xf]
    %v365 = vld [vmem:[#allocation3 + $0x1c] sm:$0xff]
    %v366 = vld [vmem:[#allocation3 + $0x24] sm:$0xff]
    %v367 = vld [vmem:[#allocation3 + $0x2c] sm:$0xff]
    %v368 = vld [vmem:[#allocation3 + $0x34] sm:$0xf]
    %v377 = vunpack.c.l.b16 %v361
    %v378 = vunpack.c.h.b16 %v361
    %v379 = vunpack.c.l.b16 %v362
    %v380 = vunpack.c.h.b16 %v362
    %v381 = vunpack.c.l.b16 %v363
    %v382 = vunpack.c.h.b16 %v363
    %v383 = vunpack.c.l.b16 %v364
    %v384 = vunpack.c.l.b16 %v365
    %v385 = vunpack.c.h.b16 %v365
    %v386 = vunpack.c.l.b16 %v366
    %v387 = vunpack.c.h.b16 %v366
    %v388 = vunpack.c.l.b16 %v367
    %v389 = vunpack.c.h.b16 %v367
    %v390 = vunpack.c.l.b16 %v368
    %v391 = vpack.c.b16 %v384, %v377
    %v392 = vpack.c.b16 %v385, %v378
    %v393 = vpack.c.b16 %v386, %v379
    %v394 = vpack.c.b16 %v387, %v380
    %v395 = vpack.c.b16 %v388, %v381
    %v396 = vpack.c.b16 %v389, %v382
    %v397 = vpack.c.b16 %v390, %v383
    %398 = vrot.lane.b32.xlu0 %v391, 108
    %v399 = vpop.permute.xlu0 %398
    %400 = vrot.lane.b32.xlu0 %v392, 108
    %v401 = vpop.permute.xlu0 %400
    %402 = vrot.lane.b32.xlu0 %v393, 108
    %v403 = vpop.permute.xlu0 %402
    %404 = vrot.lane.b32.xlu0 %v394, 108
    %v405 = vpop.permute.xlu0 %404
    %406 = vrot.lane.b32.xlu0 %v395, 108
    %v407 = vpop.permute.xlu0 %406
    %408 = vrot.lane.b32.xlu0 %v396, 108
    %v409 = vpop.permute.xlu0 %408
    %410 = vrot.lane.b32.xlu0 %v397, 108
    %v411 = vpop.permute.xlu0 %410
    %vm412 = vcmask 883712
    %v413 = vsel %vm412, %v399, %v401
    %v414 = vsel %vm412, %v401, %v403
    %v415 = vsel %vm412, %v403, %v405
    %v416 = vsel %vm412, %v405, %v407
    %v417 = vsel %vm412, %v407, %v409
    %v418 = vsel %vm412, %v409, %v411
    %425 = vst [vmem:[#allocation2 + $0xf0] sm:$0xff] %v413
    %426 = vst [vmem:[#allocation2 + $0xf8] sm:$0xff] %v414
    %427 = vst [vmem:[#allocation2 + $0x100] sm:$0xff] %v415
    %428 = vst [vmem:[#allocation2 + $0x108] sm:$0xff] %v416
    %429 = vst [vmem:[#allocation2 + $0x110] sm:$0xff] %v417
    %430 = vst [vmem:[#allocation2 + $0x118] sm:$0xff] %v418
    %v431 = vld [vmem:[#allocation3] sm:$0xff]
    %v432 = vld [vmem:[#allocation3 + $0x8] sm:$0xff]
    %v433 = vld [vmem:[#allocation3 + $0x10] sm:$0xff]
    %v434 = vld [vmem:[#allocation3 + $0x18] sm:$0xf]
    %v435 = vld [vmem:[#allocation3 + $0x1c] sm:$0xff]
    %v436 = vld [vmem:[#allocation3 + $0x24] sm:$0xff]
    %v437 = vld [vmem:[#allocation3 + $0x2c] sm:$0xff]
    %v438 = vld [vmem:[#allocation3 + $0x34] sm:$0xf]
    %v447 = vunpack.c.l.b16 %v431
    %v448 = vunpack.c.h.b16 %v431
    %v449 = vunpack.c.l.b16 %v432
    %v450 = vunpack.c.h.b16 %v432
    %v451 = vunpack.c.l.b16 %v433
    %v452 = vunpack.c.h.b16 %v433
    %v453 = vunpack.c.l.b16 %v434
    %v454 = vunpack.c.l.b16 %v435
    %v455 = vunpack.c.h.b16 %v435
    %v456 = vunpack.c.l.b16 %v436
    %v457 = vunpack.c.h.b16 %v436
    %v458 = vunpack.c.l.b16 %v437
    %v459 = vunpack.c.h.b16 %v437
    %v460 = vunpack.c.l.b16 %v438
    %v461 = vpack.c.b16 %v454, %v447
    %v462 = vpack.c.b16 %v455, %v448
    %v463 = vpack.c.b16 %v456, %v449
    %v464 = vpack.c.b16 %v457, %v450
    %v465 = vpack.c.b16 %v458, %v451
    %v466 = vpack.c.b16 %v459, %v452
    %v467 = vpack.c.b16 %v460, %v453
    %468 = vrot.lane.b32.xlu0 %v461, 92
    %v469 = vpop.permute.xlu0 %468
    %470 = vrot.lane.b32.xlu0 %v462, 92
    %v471 = vpop.permute.xlu0 %470
    %472 = vrot.lane.b32.xlu0 %v463, 92
    %v473 = vpop.permute.xlu0 %472
    %474 = vrot.lane.b32.xlu0 %v464, 92
    %v475 = vpop.permute.xlu0 %474
    %476 = vrot.lane.b32.xlu0 %v465, 92
    %v477 = vpop.permute.xlu0 %476
    %478 = vrot.lane.b32.xlu0 %v466, 92
    %v479 = vpop.permute.xlu0 %478
    %480 = vrot.lane.b32.xlu0 %v467, 92
    %v481 = vpop.permute.xlu0 %480
    %vm482 = vcmask 752640
    %v483 = vsel %vm482, %v469, %v471
    %v484 = vsel %vm482, %v471, %v473
    %v485 = vsel %vm482, %v473, %v475
    %v486 = vsel %vm482, %v475, %v477
    %v487 = vsel %vm482, %v477, %v479
    %v488 = vsel %vm482, %v479, %v481
    %495 = vst [vmem:[#allocation2 + $0x120] sm:$0xff] %v483
    %496 = vst [vmem:[#allocation2 + $0x128] sm:$0xff] %v484
    %497 = vst [vmem:[#allocation2 + $0x130] sm:$0xff] %v485
    %498 = vst [vmem:[#allocation2 + $0x138] sm:$0xff] %v486
    %499 = vst [vmem:[#allocation2 + $0x140] sm:$0xff] %v487
    %500 = vst [vmem:[#allocation2 + $0x148] sm:$0xff] %v488
    %v501 = vld [vmem:[#allocation3] sm:$0xff]
    %v502 = vld [vmem:[#allocation3 + $0x8] sm:$0xff]
    %v503 = vld [vmem:[#allocation3 + $0x10] sm:$0xff]
    %v504 = vld [vmem:[#allocation3 + $0x18] sm:$0xf]
    %v505 = vld [vmem:[#allocation3 + $0x1c] sm:$0xff]
    %v506 = vld [vmem:[#allocation3 + $0x24] sm:$0xff]
    %v507 = vld [vmem:[#allocation3 + $0x2c] sm:$0xff]
    %v508 = vld [vmem:[#allocation3 + $0x34] sm:$0xf]
    %v517 = vunpack.c.l.b16 %v501
    %v518 = vunpack.c.h.b16 %v501
    %v519 = vunpack.c.l.b16 %v502
    %v520 = vunpack.c.h.b16 %v502
    %v521 = vunpack.c.l.b16 %v503
    %v522 = vunpack.c.h.b16 %v503
    %v523 = vunpack.c.l.b16 %v504
    %v524 = vunpack.c.l.b16 %v505
    %v525 = vunpack.c.h.b16 %v505
    %v526 = vunpack.c.l.b16 %v506
    %v527 = vunpack.c.h.b16 %v506
    %v528 = vunpack.c.l.b16 %v507
    %v529 = vunpack.c.h.b16 %v507
    %v530 = vunpack.c.l.b16 %v508
    %v531 = vpack.c.b16 %v524, %v517
    %v532 = vpack.c.b16 %v525, %v518
    %v533 = vpack.c.b16 %v526, %v519
    %v534 = vpack.c.b16 %v527, %v520
    %v535 = vpack.c.b16 %v528, %v521
    %v536 = vpack.c.b16 %v529, %v522
    %v537 = vpack.c.b16 %v530, %v523
    %538 = vrot.lane.b32.xlu0 %v531, 91
    %v539 = vpop.permute.xlu0 %538
    %540 = vrot.lane.b32.xlu0 %v532, 91
    %v541 = vpop.permute.xlu0 %540
    %542 = vrot.lane.b32.xlu0 %v533, 91
    %v543 = vpop.permute.xlu0 %542
    %544 = vrot.lane.b32.xlu0 %v534, 91
    %v545 = vpop.permute.xlu0 %544
    %546 = vrot.lane.b32.xlu0 %v535, 91
    %v547 = vpop.permute.xlu0 %546
    %548 = vrot.lane.b32.xlu0 %v536, 91
    %v549 = vpop.permute.xlu0 %548
    %550 = vrot.lane.b32.xlu0 %v537, 91
    %v551 = vpop.permute.xlu0 %550
    %vm552 = vcmask 744448
    %v553 = vsel %vm552, %v539, %v541
    %v554 = vsel %vm552, %v541, %v543
    %v555 = vsel %vm552, %v543, %v545
    %v556 = vsel %vm552, %v545, %v547
    %v557 = vsel %vm552, %v547, %v549
    %v558 = vsel %vm552, %v549, %v551
    %565 = vst [vmem:[#allocation2 + $0x150] sm:$0xff] %v553
    %566 = vst [vmem:[#allocation2 + $0x158] sm:$0xff] %v554
    %567 = vst [vmem:[#allocation2 + $0x160] sm:$0xff] %v555
    %568 = vst [vmem:[#allocation2 + $0x168] sm:$0xff] %v556
    %569 = vst [vmem:[#allocation2 + $0x170] sm:$0xff] %v557
    %570 = vst [vmem:[#allocation2 + $0x178] sm:$0xff] %v558
    %v571 = vld [vmem:[#allocation3] sm:$0xff]
    %v572 = vld [vmem:[#allocation3 + $0x8] sm:$0xff]
    %v573 = vld [vmem:[#allocation3 + $0x10] sm:$0xff]
    %v574 = vld [vmem:[#allocation3 + $0x18] sm:$0xf]
    %v575 = vld [vmem:[#allocation3 + $0x1c] sm:$0xff]
    %v576 = vld [vmem:[#allocation3 + $0x24] sm:$0xff]
    %v577 = vld [vmem:[#allocation3 + $0x2c] sm:$0xff]
    %v578 = vld [vmem:[#allocation3 + $0x34] sm:$0xf]
    %v587 = vunpack.c.l.b16 %v571
    %v588 = vunpack.c.h.b16 %v571
    %v589 = vunpack.c.l.b16 %v572
    %v590 = vunpack.c.h.b16 %v572
    %v591 = vunpack.c.l.b16 %v573
    %v592 = vunpack.c.h.b16 %v573
    %v593 = vunpack.c.l.b16 %v574
    %v594 = vunpack.c.l.b16 %v575
    %v595 = vunpack.c.h.b16 %v575
    %v596 = vunpack.c.l.b16 %v576
    %v597 = vunpack.c.h.b16 %v576
    %v598 = vunpack.c.l.b16 %v577
    %v599 = vunpack.c.h.b16 %v577
    %v600 = vunpack.c.l.b16 %v578
    %v601 = vpack.c.b16 %v594, %v587
    %v602 = vpack.c.b16 %v595, %v588
    %v603 = vpack.c.b16 %v596, %v589
    %v604 = vpack.c.b16 %v597, %v590
    %v605 = vpack.c.b16 %v598, %v591
    %v606 = vpack.c.b16 %v599, %v592
    %v607 = vpack.c.b16 %v600, %v593
    %608 = vrot.lane.b32.xlu0 %v601, 90
    %v609 = vpop.permute.xlu0 %608
    %610 = vrot.lane.b32.xlu0 %v602, 90
    %v611 = vpop.permute.xlu0 %610
    %612 = vrot.lane.b32.xlu0 %v603, 90
    %v613 = vpop.permute.xlu0 %612
    %614 = vrot.lane.b32.xlu0 %v604, 90
    %v615 = vpop.permute.xlu0 %614
    %616 = vrot.lane.b32.xlu0 %v605, 90
    %v617 = vpop.permute.xlu0 %616
    %618 = vrot.lane.b32.xlu0 %v606, 90
    %v619 = vpop.permute.xlu0 %618
    %620 = vrot.lane.b32.xlu0 %v607, 90
    %v621 = vpop.permute.xlu0 %620
    %vm622 = vcmask 736256
    %v623 = vsel %vm622, %v609, %v611
    %v624 = vsel %vm622, %v611, %v613
    %v625 = vsel %vm622, %v613, %v615
    %v626 = vsel %vm622, %v615, %v617
    %v627 = vsel %vm622, %v617, %v619
    %v628 = vsel %vm622, %v619, %v621
    %635 = vst [vmem:[#allocation2 + $0x180] sm:$0xff] %v623
    %636 = vst [vmem:[#allocation2 + $0x188] sm:$0xff] %v624
    %637 = vst [vmem:[#allocation2 + $0x190] sm:$0xff] %v625
    %638 = vst [vmem:[#allocation2 + $0x198] sm:$0xff] %v626
    %639 = vst [vmem:[#allocation2 + $0x1a0] sm:$0xff] %v627
    %640 = vst [vmem:[#allocation2 + $0x1a8] sm:$0xff] %v628
    %v641 = vld [vmem:[#allocation6] sm:$0xff]
    %v642 = vld [vmem:[#allocation2] sm:$0xff]
    %v643 = vld [vmem:[#allocation2 + $0x8] sm:$0xff]
    %v644 = vld [vmem:[#allocation2 + $0x10] sm:$0xff]
    %v645 = vld [vmem:[#allocation2 + $0x18] sm:$0xff]
    %v646 = vld [vmem:[#allocation2 + $0x20] sm:$0xff]
    %v647 = vld [vmem:[#allocation2 + $0x28] sm:$0xff]
    %v648 = vld [vmem:[#allocation2 + $0x30] sm:$0xff]
    %v649 = vld [vmem:[#allocation2 + $0x38] sm:$0xff]
    %v650 = vld [vmem:[#allocation2 + $0x40] sm:$0xff]
    %v651 = vld [vmem:[#allocation2 + $0x48] sm:$0xff]
    %v652 = vld [vmem:[#allocation2 + $0x50] sm:$0xff]
    %v653 = vld [vmem:[#allocation2 + $0x58] sm:$0xff]
    %v654 = vld [vmem:[#allocation2 + $0x60] sm:$0xff]
    %v655 = vld [vmem:[#allocation2 + $0x68] sm:$0xff]
    %v656 = vld [vmem:[#allocation2 + $0x70] sm:$0xff]
    %v657 = vld [vmem:[#allocation2 + $0x78] sm:$0xff]
    %v658 = vld [vmem:[#allocation2 + $0x80] sm:$0xff]
    %v659 = vld [vmem:[#allocation2 + $0x88] sm:$0xff]
    %v660 = vld [vmem:[#allocation2 + $0x90] sm:$0xff]
    %v661 = vld [vmem:[#allocation2 + $0x98] sm:$0xff]
    %v662 = vld [vmem:[#allocation2 + $0xa0] sm:$0xff]
    %v663 = vld [vmem:[#allocation2 + $0xa8] sm:$0xff]
    %v664 = vld [vmem:[#allocation2 + $0xb0] sm:$0xff]
    %v665 = vld [vmem:[#allocation2 + $0xb8] sm:$0xff]
    %v666 = vld [vmem:[#allocation2 + $0xc0] sm:$0xff]
    %v667 = vld [vmem:[#allocation2 + $0xc8] sm:$0xff]
    %v668 = vld [vmem:[#allocation2 + $0xd0] sm:$0xff]
    %v669 = vld [vmem:[#allocation2 + $0xd8] sm:$0xff]
    %v670 = vld [vmem:[#allocation2 + $0xe0] sm:$0xff]
    %v671 = vld [vmem:[#allocation2 + $0xe8] sm:$0xff]
    %v672 = vld [vmem:[#allocation2 + $0xf0] sm:$0xff]
    %v673 = vld [vmem:[#allocation2 + $0xf8] sm:$0xff]
    %v674 = vld [vmem:[#allocation2 + $0x100] sm:$0xff]
    %v675 = vld [vmem:[#allocation2 + $0x108] sm:$0xff]
    %v676 = vld [vmem:[#allocation2 + $0x110] sm:$0xff]
    %v677 = vld [vmem:[#allocation2 + $0x118] sm:$0xff]
    %v678 = vld [vmem:[#allocation2 + $0x120] sm:$0xff]
    %v679 = vld [vmem:[#allocation2 + $0x128] sm:$0xff]
    %v680 = vld [vmem:[#allocation2 + $0x130] sm:$0xff]
    %v681 = vld [vmem:[#allocation2 + $0x138] sm:$0xff]
    %v682 = vld [vmem:[#allocation2 + $0x140] sm:$0xff]
    %v683 = vld [vmem:[#allocation2 + $0x148] sm:$0xff]
    %v684 = vld [vmem:[#allocation2 + $0x150] sm:$0xff]
    %v685 = vld [vmem:[#allocation2 + $0x158] sm:$0xff]
    %v686 = vld [vmem:[#allocation2 + $0x160] sm:$0xff]
    %v687 = vld [vmem:[#allocation2 + $0x168] sm:$0xff]
    %v688 = vld [vmem:[#allocation2 + $0x170] sm:$0xff]
    %v689 = vld [vmem:[#allocation2 + $0x178] sm:$0xff]
    %v690 = vld [vmem:[#allocation2 + $0x180] sm:$0xff]
    %v691 = vld [vmem:[#allocation2 + $0x188] sm:$0xff]
    %v692 = vld [vmem:[#allocation2 + $0x190] sm:$0xff]
    %v693 = vld [vmem:[#allocation2 + $0x198] sm:$0xff]
    %v694 = vld [vmem:[#allocation2 + $0x1a0] sm:$0xff]
    %v695 = vld [vmem:[#allocation2 + $0x1a8] sm:$0xff]
    %v697 = vunpack.c.l.b16 %v641
    %v698 = vunpack.c.h.b16 %v641
    %v699 = vpack.c.b16 %v697, %v697
    %v700 = vpack.c.b16 %v698, %v698
    %vm702 = vcmask 130048
    %v704 = vsel %vm702, %v700, 0
    %706 = vmatprep.subr.bf16.mxu0 %v643
    %707 = vmatpush1.bf16.msra.mxu0 %v642
    %708 = vmatprep.subr.bf16.mxu0 %v649
    %709 = vmatpush1.bf16.msra.mxu0 %v648
    %710 = vmatprep.subr.bf16.mxu0 %v655
    %711 = vmatpush1.bf16.msra.mxu0 %v654
    %712 = vmatprep.subr.bf16.mxu0 %v661
    %713 = vmatpush1.bf16.msra.mxu0 %v660
    %714 = vmatprep.subr.bf16.mxu0 %v667
    %715 = vmatpush1.bf16.msra.mxu0 %v666
    %716 = vmatprep.subr.bf16.mxu0 %v673
    %717 = vmatpush1.bf16.msra.mxu0 %v672
    %718 = vmatprep.subr.bf16.mxu0 %v679
    %719 = vmatpush1.bf16.msra.mxu0 %v678
    %720 = vmatprep.subr.bf16.mxu0 %v685
    %721 = vmatpush1.bf16.msra.mxu0 %v684
    %722 = vmatprep.subr.bf16.mxu0 %v691
    %723 = vmatpush1.bf16.msra.mxu0 %v690
    %724 = vmatprep.subr.bf16.mxu0 0
    %725 = vmatpush1.bf16.msra.mxu0 0
    %726 = vmatprep.subr.bf16.mxu0 0
    %727 = vmatpush1.bf16.msra.mxu0 0
    %728 = vmatprep.subr.bf16.mxu0 0
    %729 = vmatpush1.bf16.msra.mxu0 0
    %730 = vmatprep.subr.bf16.mxu0 0
    %731 = vmatpush1.bf16.msra.mxu0 0
    %732 = vmatprep.subr.bf16.mxu0 0
    %733 = vmatpush1.bf16.msra.mxu0 0
    %734 = vmatprep.subr.bf16.mxu0 0
    %735 = vmatpush1.bf16.msra.mxu0 0
    %736 = vmatprep.subr.bf16.mxu0 0
    %737 = vmatpush1.bf16.msra.mxu0 0
    %738 = vmatprep.mubr.bf16.mxu0 %v704
    %739 = vmatmul.mubr.bf16.gmra.mrb[0].mxu0 %v699
    %v740 = vpop.f32.mrb[0].mxu0
    %v741 = vadd.f32 0.0, %v740
    %v742 = vpop.f32.mrb[0].mxu0
    %v743 = vadd.f32 0.0, %v742
    %v744 = vpop.f32.mrb[0].mxu0
    %v745 = vpop.f32.mrb[0].mxu0
    %746 = vdwg.mxu0
    %747 = vmatprep.subr.bf16.mxu0 %v645
    %748 = vmatpush1.bf16.msra.mxu0 %v644
    %749 = vmatprep.subr.bf16.mxu0 %v651
    %750 = vmatpush1.bf16.msra.mxu0 %v650
    %751 = vmatprep.subr.bf16.mxu0 %v657
    %752 = vmatpush1.bf16.msra.mxu0 %v656
    %753 = vmatprep.subr.bf16.mxu0 %v663
    %754 = vmatpush1.bf16.msra.mxu0 %v662
    %755 = vmatprep.subr.bf16.mxu0 %v669
    %756 = vmatpush1.bf16.msra.mxu0 %v668
    %757 = vmatprep.subr.bf16.mxu0 %v675
    %758 = vmatpush1.bf16.msra.mxu0 %v674
    %759 = vmatprep.subr.bf16.mxu0 %v681
    %760 = vmatpush1.bf16.msra.mxu0 %v680
    %761 = vmatprep.subr.bf16.mxu0 %v687
    %762 = vmatpush1.bf16.msra.mxu0 %v686
    %763 = vmatprep.subr.bf16.mxu0 %v693
    %764 = vmatpush1.bf16.msra.mxu0 %v692
    %765 = vmatprep.subr.bf16.mxu0 0
    %766 = vmatpush1.bf16.msra.mxu0 0
    %767 = vmatprep.subr.bf16.mxu0 0
    %768 = vmatpush1.bf16.msra.mxu0 0
    %769 = vmatprep.subr.bf16.mxu0 0
    %770 = vmatpush1.bf16.msra.mxu0 0
    %771 = vmatprep.subr.bf16.mxu0 0
    %772 = vmatpush1.bf16.msra.mxu0 0
    %773 = vmatprep.subr.bf16.mxu0 0
    %774 = vmatpush1.bf16.msra.mxu0 0
    %775 = vmatprep.subr.bf16.mxu0 0
    %776 = vmatpush1.bf16.msra.mxu0 0
    %777 = vmatprep.subr.bf16.mxu0 0
    %778 = vmatpush1.bf16.msra.mxu0 0
    %779 = vmatprep.mubr.bf16.mxu0 %v704
    %780 = vmatmul.mubr.bf16.gmra.mrb[0].mxu0 %v699
    %v781 = vpop.f32.mrb[0].mxu0
    %v782 = vadd.f32 0.0, %v781
    %v783 = vpop.f32.mrb[0].mxu0
    %v784 = vadd.f32 0.0, %v783
    %v785 = vpop.f32.mrb[0].mxu0
    %v786 = vpop.f32.mrb[0].mxu0
    %787 = vdwg.mxu0
    %788 = vmatprep.subr.bf16.mxu0 %v647
    %789 = vmatpush1.bf16.msra.mxu0 %v646
    %790 = vmatprep.subr.bf16.mxu0 %v653
    %791 = vmatpush1.bf16.msra.mxu0 %v652
    %792 = vmatprep.subr.bf16.mxu0 %v659
    %793 = vmatpush1.bf16.msra.mxu0 %v658
    %794 = vmatprep.subr.bf16.mxu0 %v665
    %795 = vmatpush1.bf16.msra.mxu0 %v664
    %796 = vmatprep.subr.bf16.mxu0 %v671
    %797 = vmatpush1.bf16.msra.mxu0 %v670
    %798 = vmatprep.subr.bf16.mxu0 %v677
    %799 = vmatpush1.bf16.msra.mxu0 %v676
    %800 = vmatprep.subr.bf16.mxu0 %v683
    %801 = vmatpush1.bf16.msra.mxu0 %v682
    %802 = vmatprep.subr.bf16.mxu0 %v689
    %803 = vmatpush1.bf16.msra.mxu0 %v688
    %804 = vmatprep.subr.bf16.mxu0 %v695
    %805 = vmatpush1.bf16.msra.mxu0 %v694
    %806 = vmatprep.subr.bf16.mxu0 0
    %807 = vmatpush1.bf16.msra.mxu0 0
    %808 = vmatprep.subr.bf16.mxu0 0
    %809 = vmatpush1.bf16.msra.mxu0 0
    %810 = vmatprep.subr.bf16.mxu0 0
    %811 = vmatpush1.bf16.msra.mxu0 0
    %812 = vmatprep.subr.bf16.mxu0 0
    %813 = vmatpush1.bf16.msra.mxu0 0
    %814 = vmatprep.subr.bf16.mxu0 0
    %815 = vmatpush1.bf16.msra.mxu0 0
    %816 = vmatprep.subr.bf16.mxu0 0
    %817 = vmatpush1.bf16.msra.mxu0 0
    %818 = vmatprep.subr.bf16.mxu0 0
    %819 = vmatpush1.bf16.msra.mxu0 0
    %820 = vmatprep.mubr.bf16.mxu0 %v704
    %821 = vmatmul.mubr.bf16.gmra.mrb[0].mxu0 %v699
    %v822 = vpop.f32.mrb[0].mxu0
    %v823 = vadd.f32 0.0, %v822
    %v824 = vpop.f32.mrb[0].mxu0
    %v825 = vadd.f32 0.0, %v824
    %v826 = vpop.f32.mrb[0].mxu0
    %v827 = vpop.f32.mrb[0].mxu0
    %828 = vdwg.mxu0
    %829 = vst [vmem:[#allocation8] sm:$0xff] %v741
    %830 = vst [vmem:[#allocation8 + $0x8] sm:$0xff] %v743
    %831 = vst [vmem:[#allocation8 + $0x10] sm:$0xff] %v782
    %832 = vst [vmem:[#allocation8 + $0x18] sm:$0xff] %v784
    %833 = vst [vmem:[#allocation8 + $0x20] sm:$0xff] %v823
    %834 = vst [vmem:[#allocation8 + $0x28] sm:$0xff] %v825
    // Predicated region
    $region18: #{tpu_custom_call.1} parent=1 // pred_check
      _
    $region19: #{tpu_custom_call.1} parent=1 // pred_check_branch
      %836 = sbr.rel (0) target = $region21
    $region20: #{tpu_custom_call.1} parent=1 // pred_region
      %s838 = ssub.s32 768, 768
      %839 = vsyncadd [#allocation5], %s838
      %s841 = sshll.u32 [#allocation8], 4
      %s842 = int_to_ptr.vmem [resolvable:$true] %s841
      %844 = dma.vmem_to_hbm [thread:$0]  %s842, 768, %s2, [#allocation5]
    $region21: #{tpu_custom_call.1} parent=1 // pred_fallthru
      _
    // Predicated region
    $region22: #{tpu_custom_call.1} parent=1 // pred_check
      _
    $region23: #{tpu_custom_call.1} parent=1 // pred_check_branch
      %846 = sbr.rel (0) target = $region25
    $region24: #{tpu_custom_call.1} parent=1 // pred_region
      %847 = dma.done [#allocation5], 768
    $region25: #{tpu_custom_call.1} parent=1 // pred_fallthru
      _
    %848 = vsyncpa [#allocation4], 1
    %849 = vsyncpa [#allocation7], 1
    %850 = vsyncpa [#allocation5], 1

</llo_original>
